<compile_context>
chip_gen: v7x
topology: tpu7x:2x2x1
jax: 0.10.0
libtpu: 0.0.40
codegen_flags: <defaults>
</compile_context>

<pallas_src>
import functools

import jax
import jax.numpy as jnp
from jax.experimental import pallas as pl
from jax.experimental.pallas import tpu as pltpu

LANE = 128      # vreg lane width / MXU tile edge
SUBLANE = 8     # f32 sublane height


def _round_up(a, b):
    return (a + b - 1) // b * b


def mlp_kernel(x_ref, w1_ref, b1_ref, w2_ref, b2_ref, w3_ref, b3_ref, o_ref):
    # Layer 1: Linear(D -> H). bf16 operands, f32 accumulate on the MXU.
    h = jnp.dot(x_ref[...], w1_ref[...], preferred_element_type=jnp.float32)
    h = jnp.maximum(h + b1_ref[...], 0.0)                      # bias + ReLU on the VPU (f32)
    # Layer 2: Linear(H -> H).
    h = jnp.dot(h.astype(jnp.bfloat16), w2_ref[...],
                preferred_element_type=jnp.float32)
    h = jnp.maximum(h + b2_ref[...], 0.0)
    # Layer 3: Linear(H -> O). O is padded to 128 -> lane-dense unmasked vst.
    o = jnp.dot(h.astype(jnp.bfloat16), w3_ref[...],
                preferred_element_type=jnp.float32)
    o_ref[...] = o + b3_ref[...]


@functools.partial(jax.jit, static_argnames=("block_m",))
def mlp_forward(x, w1, b1, w2, b2, w3, b3, *, block_m=1024):
    """x: (N, L, input_size) -> (N, L, out_size) float32, matching MLP_model.forward."""
    N, L, D = x.shape
    M = N * L
    H = w1.shape[1]
    O = w3.shape[1]

    # Padded sizes: feature dims to lane width (128); rows to a multiple of the row tile.
    Dp = _round_up(D, LANE)
    Hp = _round_up(H, LANE)
    Op = _round_up(O, LANE)
    TM = block_m if M >= block_m else _round_up(M, SUBLANE)     # TM % 8 == 0
    Mp = _round_up(M, TM)

    # Flatten + zero-pad. Matmul operands cast to bf16 (f32 accumulation in-kernel),
    # biases stay f32. Padded rows/cols are zero, so they never perturb valid outputs.
    x2 = x.reshape(M, D).astype(jnp.float32)
    x_p = jnp.zeros((Mp, Dp), jnp.bfloat16).at[:M, :D].set(x2.astype(jnp.bfloat16))
    w1_p = jnp.zeros((Dp, Hp), jnp.bfloat16).at[:D, :H].set(w1.astype(jnp.bfloat16))
    w2_p = jnp.zeros((Hp, Hp), jnp.bfloat16).at[:H, :H].set(w2.astype(jnp.bfloat16))
    w3_p = jnp.zeros((Hp, Op), jnp.bfloat16).at[:H, :O].set(w3.astype(jnp.bfloat16))
    b1_p = jnp.zeros((1, Hp), jnp.float32).at[:, :H].set(b1.reshape(1, H).astype(jnp.float32))
    b2_p = jnp.zeros((1, Hp), jnp.float32).at[:, :H].set(b2.reshape(1, H).astype(jnp.float32))
    b3_p = jnp.zeros((1, Op), jnp.float32).at[:, :O].set(b3.reshape(1, O).astype(jnp.float32))

    nbytes = lambda a: a.size * a.dtype.itemsize
    cost = pl.CostEstimate(
        flops=2 * Mp * (Dp * Hp + Hp * Hp + Hp * Op),
        transcendentals=0,
        bytes_accessed=(nbytes(x_p) + nbytes(w1_p) + nbytes(w2_p) + nbytes(w3_p)
                        + nbytes(b1_p) + nbytes(b2_p) + nbytes(b3_p) + Mp * Op * 4),
    )

    out_p = pl.pallas_call(
        mlp_kernel,
        out_shape=jax.ShapeDtypeStruct((Mp, Op), jnp.float32),
        grid_spec=pl.GridSpec(
            grid=(Mp // TM,),
            in_specs=[
                pl.BlockSpec((TM, Dp), lambda i: (i, 0)),   # x tile: streamed, double-buffered
                pl.BlockSpec((Dp, Hp), lambda i: (0, 0)),   # weights/biases: VMEM-resident
                pl.BlockSpec((1, Hp), lambda i: (0, 0)),
                pl.BlockSpec((Hp, Hp), lambda i: (0, 0)),
                pl.BlockSpec((1, Hp), lambda i: (0, 0)),
                pl.BlockSpec((Hp, Op), lambda i: (0, 0)),
                pl.BlockSpec((1, Op), lambda i: (0, 0)),
            ],
            out_specs=pl.BlockSpec((TM, Op), lambda i: (i, 0)),
        ),
        compiler_params=pltpu.CompilerParams(
            dimension_semantics=("parallel",)),
        cost_estimate=cost,
    )(x_p, w1_p, b1_p, w2_p, b2_p, w3_p, b3_p)

    return out_p[:M, :O].reshape(N, L, O)


def init_params(key, input_size, hidden_size, out_size):
    """Deterministic init (uniform +-1/sqrt(fan_in), like torch.nn.Linear default)."""
    k1, k2, k3, k4, k5, k6 = jax.random.split(key, 6)

    def uni(k, shape, fan_in):
        bound = 1.0 / jnp.sqrt(fan_in)
        return jax.random.uniform(k, shape, jnp.float32, -bound, bound)

    w1 = uni(k1, (input_size, hidden_size), input_size)
    b1 = uni(k2, (1, hidden_size), input_size)
    w2 = uni(k3, (hidden_size, hidden_size), hidden_size)
    b2 = uni(k4, (1, hidden_size), hidden_size)
    w3 = uni(k5, (hidden_size, out_size), hidden_size)
    b3 = uni(k6, (1, out_size), hidden_size)
    return w1, b1, w2, b2, w3, b3


def mlp_reference(x, w1, b1, w2, b2, w3, b3):
    """Pure f32 JAX reference of MLP_model.forward."""
    N, L, D = x.shape
    h = x.reshape(N * L, D).astype(jnp.float32) @ w1 + b1
    h = jnp.maximum(h, 0.0)
    h = h @ w2 + b2
    h = jnp.maximum(h, 0.0)
    o = h @ w3 + b3
    return o.reshape(N, L, -1)


if __name__ == "__main__":
    key = jax.random.PRNGKey(0)

    # --- Small shapes consistent with forward(): (N, L, input_size) ---
    N, L, input_size, hidden_size, out_size = 2, 8, 16, 32, 1
    kx, kp, kx2 = jax.random.split(key, 3)
    x = jax.random.normal(kx, (N, L, input_size), dtype=jnp.float32)
    params = init_params(kp, input_size, hidden_size, out_size)

    out = jax.block_until_ready(mlp_forward(x, *params))
    ref = mlp_reference(x, *params)
    assert out.shape == (N, L, out_size), out.shape
    # bf16 matmul operands (f32 accumulation) -> loosened tolerance vs f32 reference.
    assert jnp.allclose(out, ref, atol=5e-2, rtol=5e-2), "mismatch vs JAX reference (small)"

    # --- Larger run exercising the multi-block pipelined path (grid > 1) ---
    N2, L2 = 4, 512                         # M = 2048, TM = 256 -> 8 grid steps
    x2 = jax.random.normal(kx2, (N2, L2, input_size), dtype=jnp.float32)
    out2 = jax.block_until_ready(mlp_forward(x2, *params, block_m=256))
    ref2 = mlp_reference(x2, *params)
    assert out2.shape == (N2, L2, out_size), out2.shape
    assert jnp.allclose(out2, ref2, atol=5e-2, rtol=5e-2), "mismatch vs JAX reference (tiled)"

    print("KERNEL_OK")
</pallas_src>

<mosaic_0001>
module attributes {stable_mosaic.version = 11 : i64} {
  func.func @mlp_kernel(%arg0: i32, %arg1: memref<16x128xbf16, #tpu.memory_space<vmem>>, %arg2: memref<128x128xbf16, #tpu.memory_space<vmem>>, %arg3: memref<1x128xf32, #tpu.memory_space<vmem>>, %arg4: memref<128x128xbf16, #tpu.memory_space<vmem>>, %arg5: memref<1x128xf32, #tpu.memory_space<vmem>>, %arg6: memref<128x128xbf16, #tpu.memory_space<vmem>>, %arg7: memref<1x128xf32, #tpu.memory_space<vmem>>, %arg8: memref<16x128xf32, #tpu.memory_space<vmem>>) attributes {dimension_semantics = [#tpu.dimension_semantics<parallel>], iteration_bounds = array<i64: 1>, scalar_prefetch = 0 : i64, scratch_operands = 0 : i64, tpu.core_type = #tpu.core_type<tc>, window_params = [{transform_indices = @transform_0, window_bounds = array<i64: 16, 128>}, {pipeline_mode = #tpu.pipeline_mode<synchronous>, transform_indices = @transform_1, window_bounds = array<i64: 128, 128>}, {pipeline_mode = #tpu.pipeline_mode<synchronous>, transform_indices = @transform_2, window_bounds = array<i64: 1, 128>}, {pipeline_mode = #tpu.pipeline_mode<synchronous>, transform_indices = @transform_3, window_bounds = array<i64: 128, 128>}, {pipeline_mode = #tpu.pipeline_mode<synchronous>, transform_indices = @transform_4, window_bounds = array<i64: 1, 128>}, {pipeline_mode = #tpu.pipeline_mode<synchronous>, transform_indices = @transform_5, window_bounds = array<i64: 128, 128>}, {pipeline_mode = #tpu.pipeline_mode<synchronous>, transform_indices = @transform_6, window_bounds = array<i64: 1, 128>}, {transform_indices = @transform_7, window_bounds = array<i64: 16, 128>}]} {
    %c0 = arith.constant 0 : index
    %c0_0 = arith.constant 0 : index
    %0 = vector.load %arg1[%c0, %c0_0] : memref<16x128xbf16, #tpu.memory_space<vmem>>, vector<16x128xbf16>
    %c0_1 = arith.constant 0 : index
    %c0_2 = arith.constant 0 : index
    %1 = vector.load %arg2[%c0_1, %c0_2] : memref<128x128xbf16, #tpu.memory_space<vmem>>, vector<128x128xbf16>
    %cst = arith.constant dense<0.000000e+00> : vector<16x128xf32>
    %2 = tpu.matmul %0, %1, %cst {dimension_numbers = #tpu.dot_dimension_numbers<[1], [0], [0], [1], [0, 0, 1, 1], [], []>} : vector<16x128xbf16>, vector<128x128xbf16>, vector<16x128xf32> -> vector<16x128xf32>
    %c0_3 = arith.constant 0 : index
    %c0_4 = arith.constant 0 : index
    %3 = vector.load %arg3[%c0_3, %c0_4] : memref<1x128xf32, #tpu.memory_space<vmem>>, vector<1x128xf32>
    %4 = vector.broadcast %3 : vector<1x128xf32> to vector<16x128xf32>
    %5 = arith.addf %2, %4 : vector<16x128xf32>
    %cst_5 = arith.constant 0.000000e+00 : f32
    %6 = vector.broadcast %cst_5 : f32 to vector<16x128xf32>
    %7 = arith.maximumf %5, %6 : vector<16x128xf32>
    %8 = arith.truncf %7 : vector<16x128xf32> to vector<16x128xbf16>
    %c0_6 = arith.constant 0 : index
    %c0_7 = arith.constant 0 : index
    %9 = vector.load %arg4[%c0_6, %c0_7] : memref<128x128xbf16, #tpu.memory_space<vmem>>, vector<128x128xbf16>
    %cst_8 = arith.constant dense<0.000000e+00> : vector<16x128xf32>
    %10 = tpu.matmul %8, %9, %cst_8 {dimension_numbers = #tpu.dot_dimension_numbers<[1], [0], [0], [1], [0, 0, 1, 1], [], []>} : vector<16x128xbf16>, vector<128x128xbf16>, vector<16x128xf32> -> vector<16x128xf32>
    %c0_9 = arith.constant 0 : index
    %c0_10 = arith.constant 0 : index
    %11 = vector.load %arg5[%c0_9, %c0_10] : memref<1x128xf32, #tpu.memory_space<vmem>>, vector<1x128xf32>
    %12 = vector.broadcast %11 : vector<1x128xf32> to vector<16x128xf32>
    %13 = arith.addf %10, %12 : vector<16x128xf32>
    %cst_11 = arith.constant 0.000000e+00 : f32
    %14 = vector.broadcast %cst_11 : f32 to vector<16x128xf32>
    %15 = arith.maximumf %13, %14 : vector<16x128xf32>
    %16 = arith.truncf %15 : vector<16x128xf32> to vector<16x128xbf16>
    %c0_12 = arith.constant 0 : index
    %c0_13 = arith.constant 0 : index
    %17 = vector.load %arg6[%c0_12, %c0_13] : memref<128x128xbf16, #tpu.memory_space<vmem>>, vector<128x128xbf16>
    %cst_14 = arith.constant dense<0.000000e+00> : vector<16x128xf32>
    %18 = tpu.matmul %16, %17, %cst_14 {dimension_numbers = #tpu.dot_dimension_numbers<[1], [0], [0], [1], [0, 0, 1, 1], [], []>} : vector<16x128xbf16>, vector<128x128xbf16>, vector<16x128xf32> -> vector<16x128xf32>
    %c0_15 = arith.constant 0 : index
    %c0_16 = arith.constant 0 : index
    %19 = vector.load %arg7[%c0_15, %c0_16] : memref<1x128xf32, #tpu.memory_space<vmem>>, vector<1x128xf32>
    %20 = vector.broadcast %19 : vector<1x128xf32> to vector<16x128xf32>
    %21 = arith.addf %18, %20 : vector<16x128xf32>
    %c0_17 = arith.constant 0 : index
    %c0_18 = arith.constant 0 : index
    %22 = vector.load %arg8[%c0_17, %c0_18] : memref<16x128xf32, #tpu.memory_space<vmem>>, vector<16x128xf32>
    tpu.vector_store %arg8[%c0_17, %c0_18], %21 {strides = array<i32>} : memref<16x128xf32, #tpu.memory_space<vmem>>, vector<16x128xf32>,
    return
  }
  func.func @transform_0(%arg0: i32) -> (i32, i32) {
    %c0_i32 = arith.constant 0 : i32
    %c0_i32_0 = arith.constant 0 : i32
    return %arg0, %c0_i32 : i32, i32
  }
  func.func @transform_1(%arg0: i32) -> (i32, i32) {
    %c0_i32 = arith.constant 0 : i32
    %c0_i32_0 = arith.constant 0 : i32
    %c0_i32_1 = arith.constant 0 : i32
    return %c0_i32, %c0_i32_0 : i32, i32
  }
  func.func @transform_2(%arg0: i32) -> (i32, i32) {
    %c0_i32 = arith.constant 0 : i32
    %c0_i32_0 = arith.constant 0 : i32
    %c0_i32_1 = arith.constant 0 : i32
    return %c0_i32, %c0_i32_0 : i32, i32
  }
  func.func @transform_3(%arg0: i32) -> (i32, i32) {
    %c0_i32 = arith.constant 0 : i32
    %c0_i32_0 = arith.constant 0 : i32
    %c0_i32_1 = arith.constant 0 : i32
    return %c0_i32, %c0_i32_0 : i32, i32
  }
  func.func @transform_4(%arg0: i32) -> (i32, i32) {
    %c0_i32 = arith.constant 0 : i32
    %c0_i32_0 = arith.constant 0 : i32
    %c0_i32_1 = arith.constant 0 : i32
    return %c0_i32, %c0_i32_0 : i32, i32
  }
  func.func @transform_5(%arg0: i32) -> (i32, i32) {
    %c0_i32 = arith.constant 0 : i32
    %c0_i32_0 = arith.constant 0 : i32
    %c0_i32_1 = arith.constant 0 : i32
    return %c0_i32, %c0_i32_0 : i32, i32
  }
  func.func @transform_6(%arg0: i32) -> (i32, i32) {
    %c0_i32 = arith.constant 0 : i32
    %c0_i32_0 = arith.constant 0 : i32
    %c0_i32_1 = arith.constant 0 : i32
    return %c0_i32, %c0_i32_0 : i32, i32
  }
  func.func @transform_7(%arg0: i32) -> (i32, i32) {
    %c0_i32 = arith.constant 0 : i32
    %c0_i32_0 = arith.constant 0 : i32
    return %arg0, %c0_i32 : i32, i32
  }
}

</mosaic_0001>

<llo_original>
// kernel: mlp_forward.1
$region0: #{mlp_forward.1}
  #allocation0 [shape = 'u32[]', space=smem, size = 0x4, offset = 0x4, fixed_abs, tag = 'smem constant byte address 0x4 - core index']
  #allocation1 [shape = 'u32[144,128]{1,0:T(1,128)}', space=vmem, size = 0x12000, scoped, tag = 'internal scratch']
  %s0 = inlined_call_operand.vmem [shape: bf16[16,128], index: 0, kind: input, shape index: {}]
  %s1 = inlined_call_operand.vmem [shape: bf16[128,128], index: 1, kind: input, shape index: {}]
  %s2 = inlined_call_operand.vmem [shape: f32[1,128], index: 2, kind: input, shape index: {}]
  %s3 = inlined_call_operand.vmem [shape: bf16[128,128], index: 3, kind: input, shape index: {}]
  %s4 = inlined_call_operand.vmem [shape: f32[1,128], index: 4, kind: input, shape index: {}]
  %s5 = inlined_call_operand.vmem [shape: bf16[128,128], index: 5, kind: input, shape index: {}]
  %s6 = inlined_call_operand.vmem [shape: f32[1,128], index: 6, kind: input, shape index: {}]
  %s7 = inlined_call_operand.vmem [shape: f32[16,128], index: 7, kind: output, shape index: {}]
  %s8 = sld [smem:[#allocation0]]
  $region38: #{mlp_forward.1} parent=0
    _
  %s10 = ssub.s32 1, %s8
  %s11 = scalar_select 0, %s10, %s8
  // Predicated region
  $region2: #{mlp_forward.1} parent=0 // pred_check
    _
  $region3: #{mlp_forward.1} parent=0 // pred_check_branch
    %13 = sbr.rel (0) target = $region5
  $region4: #{mlp_forward.1} parent=0 // pred_region
    _
  $region5: #{mlp_forward.1} parent=0 // pred_fallthru
    _
  // Predicated region
  $region6: #{mlp_forward.1} parent=0 // pred_check
    _
  $region7: #{mlp_forward.1} parent=0 // pred_check_branch
    %15 = sbr.rel (0) target = $region9
  $region8: #{mlp_forward.1} parent=0 // pred_region
    _
  $region9: #{mlp_forward.1} parent=0 // pred_fallthru
    _
  // Predicated region
  $region10: #{mlp_forward.1} parent=0 // pred_check
    _
  $region11: #{mlp_forward.1} parent=0 // pred_check_branch
    %17 = sbr.rel (0) target = $region13
  $region12: #{mlp_forward.1} parent=0 // pred_region
    _
  $region13: #{mlp_forward.1} parent=0 // pred_fallthru
    _
  // Predicated region
  $region14: #{mlp_forward.1} parent=0 // pred_check
    _
  $region15: #{mlp_forward.1} parent=0 // pred_check_branch
    %19 = sbr.rel (0) target = $region17
  $region16: #{mlp_forward.1} parent=0 // pred_region
    _
  $region17: #{mlp_forward.1} parent=0 // pred_fallthru
    _
  // Predicated region
  $region18: #{mlp_forward.1} parent=0 // pred_check
    _
  $region19: #{mlp_forward.1} parent=0 // pred_check_branch
    %21 = sbr.rel (0) target = $region21
  $region20: #{mlp_forward.1} parent=0 // pred_region
    _
  $region21: #{mlp_forward.1} parent=0 // pred_fallthru
    _
  // Predicated region
  $region22: #{mlp_forward.1} parent=0 // pred_check
    _
  $region23: #{mlp_forward.1} parent=0 // pred_check_branch
    %23 = sbr.rel (0) target = $region25
  $region24: #{mlp_forward.1} parent=0 // pred_region
    _
  $region25: #{mlp_forward.1} parent=0 // pred_fallthru
    _
  // Predicated region
  $region26: #{mlp_forward.1} parent=0 // pred_check
    _
  $region27: #{mlp_forward.1} parent=0 // pred_check_branch
    %25 = sbr.rel (0) target = $region29
  $region28: #{mlp_forward.1} parent=0 // pred_region
    _
  $region29: #{mlp_forward.1} parent=0 // pred_fallthru
    _
  %v27 = vld [vmem:[%s0] sm:$0xf]
  %v28 = vld [vmem:[%s0 + $0x4] sm:$0xf]
  %v29 = vld [vmem:[%s1] sm:$0xf]
  %v30 = vld [vmem:[%s1 + $0x4] sm:$0xf]
  %v31 = vld [vmem:[%s1 + $0x8] sm:$0xf]
  %v32 = vld [vmem:[%s1 + $0xc] sm:$0xf]
  %v33 = vld [vmem:[%s1 + $0x10] sm:$0xf]
  %v34 = vld [vmem:[%s1 + $0x14] sm:$0xf]
  %v35 = vld [vmem:[%s1 + $0x18] sm:$0xf]
  %v36 = vld [vmem:[%s1 + $0x1c] sm:$0xf]
  %v37 = vld [vmem:[%s1 + $0x20] sm:$0xf]
  %v38 = vld [vmem:[%s1 + $0x24] sm:$0xf]
  %v39 = vld [vmem:[%s1 + $0x28] sm:$0xf]
  %v40 = vld [vmem:[%s1 + $0x2c] sm:$0xf]
  %v41 = vld [vmem:[%s1 + $0x30] sm:$0xf]
  %v42 = vld [vmem:[%s1 + $0x34] sm:$0xf]
  %v43 = vld [vmem:[%s1 + $0x38] sm:$0xf]
  %v44 = vld [vmem:[%s1 + $0x3c] sm:$0xf]
  %v45 = vld [vmem:[%s2] sm:$0x1]
  %v47 = vlaneseq
  %v48 = vshrl.u32 %v47, 7
  %v49 = vsub.s32 0, %v48
  %v50 = vrot.slane %v45, %v49
  %v54 = vunpack.c.l.b16 %v27
  %v55 = vunpack.c.l.b16 %v28
  %v56 = vpack.c.b16 %v55, %v54
  %v74 = vunpack.c.l.b16 %v29
  %v75 = vunpack.c.l.b16 %v30
  %v76 = vunpack.c.l.b16 %v31
  %v77 = vunpack.c.l.b16 %v32
  %v78 = vunpack.c.l.b16 %v33
  %v79 = vunpack.c.l.b16 %v34
  %v80 = vunpack.c.l.b16 %v35
  %v81 = vunpack.c.l.b16 %v36
  %v82 = vunpack.c.l.b16 %v37
  %v83 = vunpack.c.l.b16 %v38
  %v84 = vunpack.c.l.b16 %v39
  %v85 = vunpack.c.l.b16 %v40
  %v86 = vunpack.c.l.b16 %v41
  %v87 = vunpack.c.l.b16 %v42
  %v88 = vunpack.c.l.b16 %v43
  %v89 = vunpack.c.l.b16 %v44
  %v90 = vpack.c.b16 %v75, %v74
  %v91 = vpack.c.b16 %v77, %v76
  %v92 = vpack.c.b16 %v79, %v78
  %v93 = vpack.c.b16 %v81, %v80
  %v94 = vpack.c.b16 %v83, %v82
  %v95 = vpack.c.b16 %v85, %v84
  %v96 = vpack.c.b16 %v87, %v86
  %v97 = vpack.c.b16 %v89, %v88
  %106 = vmatprep.subr.bf16.mxu0 0
  %107 = vmatpush1.bf16.msra.mxu0 %v90
  %108 = vmatprep.subr.bf16.mxu0 0
  %109 = vmatpush1.bf16.msra.mxu0 %v91
  %110 = vmatprep.subr.bf16.mxu0 0
  %111 = vmatpush1.bf16.msra.mxu0 %v92
  %112 = vmatprep.subr.bf16.mxu0 0
  %113 = vmatpush1.bf16.msra.mxu0 %v93
  %114 = vmatprep.subr.bf16.mxu0 0
  %115 = vmatpush1.bf16.msra.mxu0 %v94
  %116 = vmatprep.subr.bf16.mxu0 0
  %117 = vmatpush1.bf16.msra.mxu0 %v95
  %118 = vmatprep.subr.bf16.mxu0 0
  %119 = vmatpush1.bf16.msra.mxu0 %v96
  %120 = vmatprep.subr.bf16.mxu0 0
  %121 = vmatpush1.bf16.msra.mxu0 %v97
  %122 = vmatprep.subr.bf16.mxu0 0
  %123 = vmatpush1.bf16.msra.mxu0 0
  %124 = vmatprep.subr.bf16.mxu0 0
  %125 = vmatpush1.bf16.msra.mxu0 0
  %126 = vmatprep.subr.bf16.mxu0 0
  %127 = vmatpush1.bf16.msra.mxu0 0
  %128 = vmatprep.subr.bf16.mxu0 0
  %129 = vmatpush1.bf16.msra.mxu0 0
  %130 = vmatprep.subr.bf16.mxu0 0
  %131 = vmatpush1.bf16.msra.mxu0 0
  %132 = vmatprep.subr.bf16.mxu0 0
  %133 = vmatpush1.bf16.msra.mxu0 0
  %134 = vmatprep.subr.bf16.mxu0 0
  %135 = vmatpush1.bf16.msra.mxu0 0
  %136 = vmatprep.subr.bf16.mxu0 0
  %137 = vmatpush1.bf16.msra.mxu0 0
  %138 = vmatprep.mubr.bf16.mxu0 0
  %139 = vmatmul.mubr.bf16.gmra.mrb[0].mxu0 %v56
  %v140 = vpop.f32.mrb[0].mxu0
  %v141 = vadd.f32 %v50, %v140
  %v142 = vpop.f32.mrb[0].mxu0
  %v143 = vpop.f32.mrb[0].mxu0
  %v144 = vadd.f32 %v50, %v143
  %v145 = vpop.f32.mrb[0].mxu0
  %146 = vdwg.mxu0
  %v147 = vmax.f32 %v141, 0.0
  %v148 = vmax.f32 %v144, 0.0
  %v149 = vpack.c.bf16 %v148, %v147
  %v150 = vld [vmem:[%s3] sm:$0xf]
  %v151 = vld [vmem:[%s3 + $0x4] sm:$0xf]
  %v152 = vld [vmem:[%s3 + $0x8] sm:$0xf]
  %v153 = vld [vmem:[%s3 + $0xc] sm:$0xf]
  %v154 = vld [vmem:[%s3 + $0x10] sm:$0xf]
  %v155 = vld [vmem:[%s3 + $0x14] sm:$0xf]
  %v156 = vld [vmem:[%s3 + $0x18] sm:$0xf]
  %v157 = vld [vmem:[%s3 + $0x1c] sm:$0xf]
  %v158 = vld [vmem:[%s3 + $0x20] sm:$0xf]
  %v159 = vld [vmem:[%s3 + $0x24] sm:$0xf]
  %v160 = vld [vmem:[%s3 + $0x28] sm:$0xf]
  %v161 = vld [vmem:[%s3 + $0x2c] sm:$0xf]
  %v162 = vld [vmem:[%s3 + $0x30] sm:$0xf]
  %v163 = vld [vmem:[%s3 + $0x34] sm:$0xf]
  %v164 = vld [vmem:[%s3 + $0x38] sm:$0xf]
  %v165 = vld [vmem:[%s3 + $0x3c] sm:$0xf]
  %v166 = vld [vmem:[%s4] sm:$0x1]
  %v168 = vlaneseq
  %v169 = vshrl.u32 %v168, 7
  %v170 = vsub.s32 0, %v169
  %v171 = vrot.slane %v166, %v170
  %v189 = vunpack.c.l.b16 %v150
  %v190 = vunpack.c.l.b16 %v151
  %v191 = vunpack.c.l.b16 %v152
  %v192 = vunpack.c.l.b16 %v153
  %v193 = vunpack.c.l.b16 %v154
  %v194 = vunpack.c.l.b16 %v155
  %v195 = vunpack.c.l.b16 %v156
  %v196 = vunpack.c.l.b16 %v157
  %v197 = vunpack.c.l.b16 %v158
  %v198 = vunpack.c.l.b16 %v159
  %v199 = vunpack.c.l.b16 %v160
  %v200 = vunpack.c.l.b16 %v161
  %v201 = vunpack.c.l.b16 %v162
  %v202 = vunpack.c.l.b16 %v163
  %v203 = vunpack.c.l.b16 %v164
  %v204 = vunpack.c.l.b16 %v165
  %v205 = vpack.c.b16 %v190, %v189
  %v206 = vpack.c.b16 %v192, %v191
  %v207 = vpack.c.b16 %v194, %v193
  %v208 = vpack.c.b16 %v196, %v195
  %v209 = vpack.c.b16 %v198, %v197
  %v210 = vpack.c.b16 %v200, %v199
  %v211 = vpack.c.b16 %v202, %v201
  %v212 = vpack.c.b16 %v204, %v203
  %221 = vmatprep.subr.bf16.mxu0 0
  %222 = vmatpush1.bf16.msra.mxu0 %v205
  %223 = vmatprep.subr.bf16.mxu0 0
  %224 = vmatpush1.bf16.msra.mxu0 %v206
  %225 = vmatprep.subr.bf16.mxu0 0
  %226 = vmatpush1.bf16.msra.mxu0 %v207
  %227 = vmatprep.subr.bf16.mxu0 0
  %228 = vmatpush1.bf16.msra.mxu0 %v208
  %229 = vmatprep.subr.bf16.mxu0 0
  %230 = vmatpush1.bf16.msra.mxu0 %v209
  %231 = vmatprep.subr.bf16.mxu0 0
  %232 = vmatpush1.bf16.msra.mxu0 %v210
  %233 = vmatprep.subr.bf16.mxu0 0
  %234 = vmatpush1.bf16.msra.mxu0 %v211
  %235 = vmatprep.subr.bf16.mxu0 0
  %236 = vmatpush1.bf16.msra.mxu0 %v212
  %237 = vmatprep.subr.bf16.mxu0 0
  %238 = vmatpush1.bf16.msra.mxu0 0
  %239 = vmatprep.subr.bf16.mxu0 0
  %240 = vmatpush1.bf16.msra.mxu0 0
  %241 = vmatprep.subr.bf16.mxu0 0
  %242 = vmatpush1.bf16.msra.mxu0 0
  %243 = vmatprep.subr.bf16.mxu0 0
  %244 = vmatpush1.bf16.msra.mxu0 0
  %245 = vmatprep.subr.bf16.mxu0 0
  %246 = vmatpush1.bf16.msra.mxu0 0
  %247 = vmatprep.subr.bf16.mxu0 0
  %248 = vmatpush1.bf16.msra.mxu0 0
  %249 = vmatprep.subr.bf16.mxu0 0
  %250 = vmatpush1.bf16.msra.mxu0 0
  %251 = vmatprep.subr.bf16.mxu0 0
  %252 = vmatpush1.bf16.msra.mxu0 0
  %253 = vmatprep.mubr.bf16.mxu0 0
  %254 = vmatmul.mubr.bf16.gmra.mrb[0].mxu0 %v149
  %v255 = vpop.f32.mrb[0].mxu0
  %v256 = vadd.f32 %v171, %v255
  %v257 = vpop.f32.mrb[0].mxu0
  %v258 = vpop.f32.mrb[0].mxu0
  %v259 = vadd.f32 %v171, %v258
  %v260 = vpop.f32.mrb[0].mxu0
  %261 = vdwg.mxu0
  %v262 = vmax.f32 %v256, 0.0
  %v263 = vmax.f32 %v259, 0.0
  %v264 = vpack.c.bf16 %v263, %v262
  %v265 = vld [vmem:[%s5] sm:$0xf]
  %v266 = vld [vmem:[%s5 + $0x4] sm:$0xf]
  %v267 = vld [vmem:[%s5 + $0x8] sm:$0xf]
  %v268 = vld [vmem:[%s5 + $0xc] sm:$0xf]
  %v269 = vld [vmem:[%s5 + $0x10] sm:$0xf]
  %v270 = vld [vmem:[%s5 + $0x14] sm:$0xf]
  %v271 = vld [vmem:[%s5 + $0x18] sm:$0xf]
  %v272 = vld [vmem:[%s5 + $0x1c] sm:$0xf]
  %v273 = vld [vmem:[%s5 + $0x20] sm:$0xf]
  %v274 = vld [vmem:[%s5 + $0x24] sm:$0xf]
  %v275 = vld [vmem:[%s5 + $0x28] sm:$0xf]
  %v276 = vld [vmem:[%s5 + $0x2c] sm:$0xf]
  %v277 = vld [vmem:[%s5 + $0x30] sm:$0xf]
  %v278 = vld [vmem:[%s5 + $0x34] sm:$0xf]
  %v279 = vld [vmem:[%s5 + $0x38] sm:$0xf]
  %v280 = vld [vmem:[%s5 + $0x3c] sm:$0xf]
  %v281 = vld [vmem:[%s6] sm:$0x1]
  %v283 = vlaneseq
  %v284 = vshrl.u32 %v283, 7
  %v285 = vsub.s32 0, %v284
  %v286 = vrot.slane %v281, %v285
  %v304 = vunpack.c.l.b16 %v265
  %v305 = vunpack.c.l.b16 %v266
  %v306 = vunpack.c.l.b16 %v267
  %v307 = vunpack.c.l.b16 %v268
  %v308 = vunpack.c.l.b16 %v269
  %v309 = vunpack.c.l.b16 %v270
  %v310 = vunpack.c.l.b16 %v271
  %v311 = vunpack.c.l.b16 %v272
  %v312 = vunpack.c.l.b16 %v273
  %v313 = vunpack.c.l.b16 %v274
  %v314 = vunpack.c.l.b16 %v275
  %v315 = vunpack.c.l.b16 %v276
  %v316 = vunpack.c.l.b16 %v277
  %v317 = vunpack.c.l.b16 %v278
  %v318 = vunpack.c.l.b16 %v279
  %v319 = vunpack.c.l.b16 %v280
  %v320 = vpack.c.b16 %v305, %v304
  %v321 = vpack.c.b16 %v307, %v306
  %v322 = vpack.c.b16 %v309, %v308
  %v323 = vpack.c.b16 %v311, %v310
  %v324 = vpack.c.b16 %v313, %v312
  %v325 = vpack.c.b16 %v315, %v314
  %v326 = vpack.c.b16 %v317, %v316
  %v327 = vpack.c.b16 %v319, %v318
  %336 = vmatprep.subr.bf16.mxu0 0
  %337 = vmatpush1.bf16.msra.mxu0 %v320
  %338 = vmatprep.subr.bf16.mxu0 0
  %339 = vmatpush1.bf16.msra.mxu0 %v321
  %340 = vmatprep.subr.bf16.mxu0 0
  %341 = vmatpush1.bf16.msra.mxu0 %v322
  %342 = vmatprep.subr.bf16.mxu0 0
  %343 = vmatpush1.bf16.msra.mxu0 %v323
  %344 = vmatprep.subr.bf16.mxu0 0
  %345 = vmatpush1.bf16.msra.mxu0 %v324
  %346 = vmatprep.subr.bf16.mxu0 0
  %347 = vmatpush1.bf16.msra.mxu0 %v325
  %348 = vmatprep.subr.bf16.mxu0 0
  %349 = vmatpush1.bf16.msra.mxu0 %v326
  %350 = vmatprep.subr.bf16.mxu0 0
  %351 = vmatpush1.bf16.msra.mxu0 %v327
  %352 = vmatprep.subr.bf16.mxu0 0
  %353 = vmatpush1.bf16.msra.mxu0 0
  %354 = vmatprep.subr.bf16.mxu0 0
  %355 = vmatpush1.bf16.msra.mxu0 0
  %356 = vmatprep.subr.bf16.mxu0 0
  %357 = vmatpush1.bf16.msra.mxu0 0
  %358 = vmatprep.subr.bf16.mxu0 0
  %359 = vmatpush1.bf16.msra.mxu0 0
  %360 = vmatprep.subr.bf16.mxu0 0
  %361 = vmatpush1.bf16.msra.mxu0 0
  %362 = vmatprep.subr.bf16.mxu0 0
  %363 = vmatpush1.bf16.msra.mxu0 0
  %364 = vmatprep.subr.bf16.mxu0 0
  %365 = vmatpush1.bf16.msra.mxu0 0
  %366 = vmatprep.subr.bf16.mxu0 0
  %367 = vmatpush1.bf16.msra.mxu0 0
  %368 = vmatprep.mubr.bf16.mxu0 0
  %369 = vmatmul.mubr.bf16.gmra.mrb[0].mxu0 %v264
  %v370 = vpop.f32.mrb[0].mxu0
  %v371 = vadd.f32 %v286, %v370
  %v372 = vpop.f32.mrb[0].mxu0
  %v373 = vpop.f32.mrb[0].mxu0
  %v374 = vadd.f32 %v286, %v373
  %v375 = vpop.f32.mrb[0].mxu0
  %376 = vdwg.mxu0
  %377 = vst [vmem:[%s7] sm:$0xff] %v371
  %378 = vst [vmem:[%s7 + $0x8] sm:$0xff] %v374
  // Predicated region
  $region30: #{mlp_forward.1} parent=0 // pred_check
    _
  $region31: #{mlp_forward.1} parent=0 // pred_check_branch
    %380 = sbr.rel (0) target = $region33
  $region32: #{mlp_forward.1} parent=0 // pred_region
    _
  $region33: #{mlp_forward.1} parent=0 // pred_fallthru
    _
  // Predicated region
  $region34: #{mlp_forward.1} parent=0 // pred_check
    _
  $region35: #{mlp_forward.1} parent=0 // pred_check_branch
    %382 = sbr.rel (0) target = $region37
  $region36: #{mlp_forward.1} parent=0 // pred_region
    _
  $region37: #{mlp_forward.1} parent=0 // pred_fallthru
    _

</llo_original>
